<compile_context>
chip_gen: v7x
topology: tpu7x:2x2x1
jax: 0.10.0
libtpu: 0.0.40
codegen_flags: <defaults>
</compile_context>

<pallas_src>
import jax
import jax.numpy as jnp
from jax.experimental import pallas as pl
from jax.experimental.pallas import tpu as pltpu


def linear_kernel(x_ref, wb_ref, o_ref):
    # x_ref  : (B, IN)        VMEM
    # wb_ref : (IN + 1, OUT)  VMEM  (rows 0..IN-1 = W.T, row IN = bias)
    # o_ref  : (B, OUT)       VMEM
    IN = x_ref.shape[1]

    x = x_ref[...]                      # (B, IN)
    w_t = wb_ref[:IN, :]                # (IN, OUT)  static slice — zero-cost view
    b = wb_ref[IN:IN + 1, :]            # (1, OUT)   already a broadcast-ready row

    # Single MXU push/pop with f32 accumulation; no 3-D temp, no XLU broadcasts.
    acc = jnp.dot(x, w_t, preferred_element_type=jnp.float32)   # (B, OUT) f32

    o_ref[...] = (acc + b).astype(o_ref.dtype)   # cast is a no-op for f32 output


def pack_linear_params(weight, bias):
    """Build the packed (IN+1, OUT) parameter ONCE at init time.

    weight: (OUT, IN) in native nn.Linear layout; bias: (OUT,).
    Row layout: rows 0..IN-1 hold W.T, row IN holds the bias.
    """
    return jnp.concatenate([weight.T, bias[None, :]], axis=0)


def linear_forward(x, wb_packed):
    """y = x @ W.T + b (nn.Linear semantics) using the packed parameter buffer."""
    B, IN = x.shape
    IN1, OUT = wb_packed.shape
    assert IN1 == IN + 1

    flops = 2 * B * IN * OUT
    bytes_accessed = 4 * (B * IN + (IN + 1) * OUT + B * OUT)

    return pl.pallas_call(
        linear_kernel,
        out_shape=jax.ShapeDtypeStruct((B, OUT), x.dtype),
        # No grid: single invocation, whole arrays resident in VMEM (2 input DMAs).
        in_specs=[
            pl.BlockSpec(memory_space=pltpu.VMEM),   # x            (B, IN)
            pl.BlockSpec(memory_space=pltpu.VMEM),   # packed W.T|b (IN+1, OUT)
        ],
        out_specs=pl.BlockSpec(memory_space=pltpu.VMEM),
        cost_estimate=pl.CostEstimate(
            flops=flops, transcendentals=0, bytes_accessed=bytes_accessed),
    )(x, wb_packed)


if __name__ == "__main__":
    key = jax.random.PRNGKey(0)
    k_x, k_w, k_b = jax.random.split(key, 3)

    B, IN, OUT = 2, 4, 5

    # Input matching `torch.randn(2, 4)`
    x = jax.random.normal(k_x, (B, IN), dtype=jnp.float32)

    # Deterministic parameters (nn.Linear shapes: W=(5,4), b=(5,)),
    # mimicking PyTorch's default U(-1/sqrt(in), 1/sqrt(in)) init.
    bound = 1.0 / jnp.sqrt(jnp.float32(IN))
    weight = jax.random.uniform(k_w, (OUT, IN), minval=-bound, maxval=bound,
                                dtype=jnp.float32)
    bias = jax.random.uniform(k_b, (OUT,), minval=-bound, maxval=bound,
                              dtype=jnp.float32)

    # Init-time packing (done once; the forward call does no per-call transforms).
    wb_packed = pack_linear_params(weight, bias)

    y = linear_forward(x, wb_packed)
    y = jax.block_until_ready(y)

    # Correctness check against plain JAX reference (nn.Linear semantics).
    y_ref = x @ weight.T + bias
    assert y.shape == (B, OUT)
    assert jnp.allclose(y, y_ref, atol=1e-5, rtol=1e-5)

    print("KERNEL_OK")
</pallas_src>

<mosaic_0001>
module attributes {stable_mosaic.version = 11 : i64} {
  func.func @linear_kernel(%arg0: memref<2x4xf32, #tpu.memory_space<vmem>>, %arg1: memref<5x5xf32, #tpu.memory_space<vmem>>, %arg2: memref<2x5xf32, #tpu.memory_space<vmem>>) attributes {dimension_semantics = [], scalar_prefetch = 0 : i64, scratch_operands = 0 : i64, tpu.core_type = #tpu.core_type<tc>} {
    %c0 = arith.constant 0 : index
    %c0_0 = arith.constant 0 : index
    %0 = vector.load %arg0[%c0, %c0_0] : memref<2x4xf32, #tpu.memory_space<vmem>>, vector<2x4xf32>
    %c0_1 = arith.constant 0 : index
    %c0_2 = arith.constant 0 : index
    %1 = vector.load %arg1[%c0_1, %c0_2] : memref<5x5xf32, #tpu.memory_space<vmem>>, vector<4x5xf32>
    %c4 = arith.constant 4 : index
    %c0_3 = arith.constant 0 : index
    %2 = vector.load %arg1[%c4, %c0_3] : memref<5x5xf32, #tpu.memory_space<vmem>>, vector<1x5xf32>
    %cst = arith.constant dense<0.000000e+00> : vector<2x5xf32>
    %3 = tpu.matmul %0, %1, %cst {dimension_numbers = #tpu.dot_dimension_numbers<[1], [0], [0], [1], [0, 0, 1, 1], [], []>} : vector<2x4xf32>, vector<4x5xf32>, vector<2x5xf32> -> vector<2x5xf32>
    %4 = vector.broadcast %2 : vector<1x5xf32> to vector<2x5xf32>
    %5 = arith.addf %3, %4 : vector<2x5xf32>
    %c0_4 = arith.constant 0 : index
    %c0_5 = arith.constant 0 : index
    %6 = vector.load %arg2[%c0_4, %c0_5] : memref<2x5xf32, #tpu.memory_space<vmem>>, vector<2x5xf32>
    tpu.vector_store %arg2[%c0_4, %c0_5], %5 {strides = array<i32>} : memref<2x5xf32, #tpu.memory_space<vmem>>, vector<2x5xf32>,
    return
  }
}

</mosaic_0001>

<llo_original>
// kernel: tpu_custom_call.1
$region0: #{tpu_custom_call.1}
  #allocation0 [shape = 'u32[]', space=smem, size = 0x4, offset = 0x4, fixed_abs, tag = 'smem constant byte address 0x4 - core index']
  #allocation1 [shape = 'u32[144,128]{1,0:T(1,128)}', space=vmem, size = 0x12000, scoped, tag = 'internal scratch']
  %s0 = inlined_call_operand.hbm [shape: f32[2,4], index: 0, kind: input, shape index: {}]
  %s1 = inlined_call_operand.hbm [shape: f32[5,5], index: 1, kind: input, shape index: {}]
  %s2 = inlined_call_operand.hbm [shape: f32[2,5], index: 2, kind: output, shape index: {}]
  %s3 = sld [smem:[#allocation0]]
  $region26: #{tpu_custom_call.1} parent=0
    _
  %s5 = ssub.s32 1, %s3
  %s6 = scalar_select 0, %s5, %s3
  $region1: #{tpu_custom_call.1} parent=0
    #allocation2 [shape = 'u8[1024]{0}', space=vmem, size = 0x400, scoped, tag = 'input window, operand 0, single buffered']
    #allocation3 [shape = 's32[1]{0}', space=sflag, size = 0x4, scoped, tag = 'scoped memory for tpu_custom_call.1']
    #allocation4 [shape = 's32[1]{0}', space=sflag, size = 0x4, scoped, tag = 'scoped memory for tpu_custom_call.1']
    #allocation5 [shape = 'u8[4096]{0}', space=vmem, size = 0x1000, scoped, tag = 'input window, operand 1, single buffered']
    #allocation6 [shape = 's32[1]{0}', space=sflag, size = 0x4, scoped, tag = 'scoped memory for tpu_custom_call.1']
    #allocation7 [shape = 'u8[1024]{0}', space=vmem, size = 0x400, scoped, tag = 'output window, operand 0, single buffered']
    %7 = vsyncpa [#allocation3], 0
    %8 = vsyncpa [#allocation6], 0
    %9 = vsyncpa [#allocation4], 0
    // Predicated region
    $region2: #{tpu_custom_call.1} parent=1 // pred_check
      _
    $region3: #{tpu_custom_call.1} parent=1 // pred_check_branch
      %11 = sbr.rel (0) target = $region5
    $region4: #{tpu_custom_call.1} parent=1 // pred_region
      %s13 = ssub.s32 32, 32
      %14 = vsyncadd [#allocation3], %s13
      %s16 = sshll.u32 [#allocation2], 4
      %s17 = int_to_ptr.vmem [resolvable:$true] %s16
      %19 = dma.hbm_to_vmem [thread:$0]  %s0, 32, %s17, [#allocation3]
    $region5: #{tpu_custom_call.1} parent=1 // pred_fallthru
      _
    // Predicated region
    $region6: #{tpu_custom_call.1} parent=1 // pred_check
      _
    $region7: #{tpu_custom_call.1} parent=1 // pred_check_branch
      %21 = sbr.rel (0) target = $region9
    $region8: #{tpu_custom_call.1} parent=1 // pred_region
      %s23 = ssub.s32 128, 128
      %24 = vsyncadd [#allocation6], %s23
      %s26 = sshll.u32 [#allocation5], 4
      %s27 = int_to_ptr.vmem [resolvable:$true] %s26
      %29 = dma.hbm_to_vmem [thread:$0]  %s1, 128, %s27, [#allocation6]
    $region9: #{tpu_custom_call.1} parent=1 // pred_fallthru
      _
    // Predicated region
    $region10: #{tpu_custom_call.1} parent=1 // pred_check
      _
    $region11: #{tpu_custom_call.1} parent=1 // pred_check_branch
      %31 = sbr.rel (0) target = $region13
    $region12: #{tpu_custom_call.1} parent=1 // pred_region
      %32 = dma.done [#allocation3], 32
    $region13: #{tpu_custom_call.1} parent=1 // pred_fallthru
      _
    // Predicated region
    $region14: #{tpu_custom_call.1} parent=1 // pred_check
      _
    $region15: #{tpu_custom_call.1} parent=1 // pred_check_branch
      %34 = sbr.rel (0) target = $region17
    $region16: #{tpu_custom_call.1} parent=1 // pred_region
      %35 = dma.done [#allocation6], 128
    $region17: #{tpu_custom_call.1} parent=1 // pred_fallthru
      _
    %v36 = vld [vmem:[#allocation2] sm:$0x3]
    %v37 = vld [vmem:[#allocation5] sm:$0xf]
    %v38 = vld [vmem:[#allocation5 + $0x4] sm:$0x1]
    %v39 = vlaneseq
    %v40 = vshrl.u32 %v39, 7
    %v41 = vsub.s32 0, %v40
    %v42 = vrot.slane %v38, %v41
    %vm43 = vcmask 31744
    %v45 = vsel %vm43, %v36, 0
    %vm47 = vcmask 1043456
    %v49 = vsel %vm47, %v37, 0
    %51 = vmatprep.subr.mxu0 0.0
    %52 = vmatpush1.msra.mxu0 %v49
    %53 = vmatprep.subr.mxu0 0.0
    %54 = vmatpush1.msra.mxu0 0.0
    %55 = vmatprep.subr.mxu0 0.0
    %56 = vmatpush1.msra.mxu0 0.0
    %57 = vmatprep.subr.mxu0 0.0
    %58 = vmatpush1.msra.mxu0 0.0
    %59 = vmatprep.subr.mxu0 0.0
    %60 = vmatpush1.msra.mxu0 0.0
    %61 = vmatprep.subr.mxu0 0.0
    %62 = vmatpush1.msra.mxu0 0.0
    %63 = vmatprep.subr.mxu0 0.0
    %64 = vmatpush1.msra.mxu0 0.0
    %65 = vmatprep.subr.mxu0 0.0
    %66 = vmatpush1.msra.mxu0 0.0
    %67 = vmatprep.subr.mxu0 0.0
    %68 = vmatpush1.msra.mxu0 0.0
    %69 = vmatprep.subr.mxu0 0.0
    %70 = vmatpush1.msra.mxu0 0.0
    %71 = vmatprep.subr.mxu0 0.0
    %72 = vmatpush1.msra.mxu0 0.0
    %73 = vmatprep.subr.mxu0 0.0
    %74 = vmatpush1.msra.mxu0 0.0
    %75 = vmatprep.subr.mxu0 0.0
    %76 = vmatpush1.msra.mxu0 0.0
    %77 = vmatprep.subr.mxu0 0.0
    %78 = vmatpush1.msra.mxu0 0.0
    %79 = vmatprep.subr.mxu0 0.0
    %80 = vmatpush1.msra.mxu0 0.0
    %81 = vmatprep.subr.mxu0 0.0
    %82 = vmatpush1.msra.mxu0 0.0
    %83 = vmatprep.subr.mxu0 0.0
    %84 = vmatpush1.msra.mxu0 0.0
    %85 = vmatprep.subr.mxu0 0.0
    %86 = vmatpush1.msra.mxu0 0.0
    %87 = vmatprep.subr.mxu0 0.0
    %88 = vmatpush1.msra.mxu0 0.0
    %89 = vmatprep.subr.mxu0 0.0
    %90 = vmatpush1.msra.mxu0 0.0
    %91 = vmatprep.subr.mxu0 0.0
    %92 = vmatpush1.msra.mxu0 0.0
    %93 = vmatprep.subr.mxu0 0.0
    %94 = vmatpush1.msra.mxu0 0.0
    %95 = vmatprep.subr.mxu0 0.0
    %96 = vmatpush1.msra.mxu0 0.0
    %97 = vmatprep.subr.mxu0 0.0
    %98 = vmatpush1.msra.mxu0 0.0
    %99 = vmatprep.subr.mxu0 0.0
    %100 = vmatpush1.msra.mxu0 0.0
    %101 = vmatprep.subr.mxu0 0.0
    %102 = vmatpush1.msra.mxu0 0.0
    %103 = vmatprep.subr.mxu0 0.0
    %104 = vmatpush1.msra.mxu0 0.0
    %105 = vmatprep.subr.mxu0 0.0
    %106 = vmatpush1.msra.mxu0 0.0
    %107 = vmatprep.subr.mxu0 0.0
    %108 = vmatpush1.msra.mxu0 0.0
    %109 = vmatprep.subr.mxu0 0.0
    %110 = vmatpush1.msra.mxu0 0.0
    %111 = vmatprep.subr.mxu0 0.0
    %112 = vmatpush1.msra.mxu0 0.0
    %113 = vmatprep.subr.mxu0 0.0
    %114 = vmatpush1.msra.mxu0 0.0
    %115 = vmatprep.mubr.f32.mxu0 0.0
    %116 = vmatmul.mubr.f32.gmra.mrb[0].mxu0 %v45
    %v117 = vpop.f32.mrb[0].mxu0
    %v118 = vadd.f32 %v42, %v117
    %v119 = vpop.f32.mrb[0].mxu0
    %120 = vdwg.mxu0
    %vm121 = vcmask 33792
    %122 = vst.msk [vmem:[#allocation7] sm:$0x3] %vm121, %v118
    // Predicated region
    $region18: #{tpu_custom_call.1} parent=1 // pred_check
      _
    $region19: #{tpu_custom_call.1} parent=1 // pred_check_branch
      %124 = sbr.rel (0) target = $region21
    $region20: #{tpu_custom_call.1} parent=1 // pred_region
      %s126 = ssub.s32 32, 32
      %127 = vsyncadd [#allocation4], %s126
      %s129 = sshll.u32 [#allocation7], 4
      %s130 = int_to_ptr.vmem [resolvable:$true] %s129
      %132 = dma.vmem_to_hbm [thread:$0]  %s130, 32, %s2, [#allocation4]
    $region21: #{tpu_custom_call.1} parent=1 // pred_fallthru
      _
    // Predicated region
    $region22: #{tpu_custom_call.1} parent=1 // pred_check
      _
    $region23: #{tpu_custom_call.1} parent=1 // pred_check_branch
      %134 = sbr.rel (0) target = $region25
    $region24: #{tpu_custom_call.1} parent=1 // pred_region
      %135 = dma.done [#allocation4], 32
    $region25: #{tpu_custom_call.1} parent=1 // pred_fallthru
      _
    %136 = vsyncpa [#allocation3], 1
    %137 = vsyncpa [#allocation6], 1
    %138 = vsyncpa [#allocation4], 1

</llo_original>
